<compile_context>
chip_gen: v5e
topology: v5e:2x2
jax: 0.10.0
libtpu: 0.0.40
codegen_flags: <defaults>
</compile_context>

<pallas_src>
import functools
import math

import jax
import jax.numpy as jnp
from jax.experimental import pallas as pl
from jax.experimental.pallas import tpu as pltpu


def _dot_attention_kernel(k_ref, q_ref, gamma_ref, beta_ref, o_ref, acc_ref, *,
                          tt, inv_scale, l_norm, compute_dtype, eps=1e-5):
    t = pl.program_id(1)
    n_t = pl.num_programs(1)

    @pl.when(t == 0)
    def _():
        acc_ref[...] = jnp.zeros_like(acc_ref)

    k = k_ref[...]                                              # (TB, S, D); k == v
    # Fold 1/sqrt(S) into q (never into k: k is reused as v).
    q = (q_ref[...] * inv_scale).astype(compute_dtype)          # (TB, D, Tt)

    # energy[b, s, t] = sum_d k[b, s, d] * q[b, d, t]   (MXU, f32 accumulate)
    energy = jnp.einsum("bsd,bdt->bst", k.astype(compute_dtype), q,
                        preferred_element_type=jnp.float32)     # (TB, S, Tt)

    # softmax over torch dim=1 == the key/row axis s: column-local -> exact
    # per-tile softmax, no online rescaling needed across t tiles.
    m = jnp.max(energy, axis=1, keepdims=True)                  # (TB, 1, Tt)
    if compute_dtype == jnp.bfloat16:
        # bf16 exp: uses the bf16-capable EUP on v6e/v7x and merges with the
        # cast needed for the second matmul (denominator still summed in f32).
        e = jnp.exp((energy - m).astype(compute_dtype))         # (TB, S, Tt)
    else:
        e = jnp.exp(energy - m)
    denom = jnp.sum(e.astype(jnp.float32), axis=1, keepdims=True)
    inv_denom = pl.reciprocal(denom, approx=True)               # (TB, 1, Tt) EUP

    # v rows for this t tile, pre-scaled by 1/denom (Tt*D mults instead of an
    # (S,Tt) rescale; the swapaxes of a (TB,1,Tt) vector is a tiny XLU move).
    if tt == k_ref.shape[1]:            # single t tile: v rows == whole k slab
        v_rows = k
    else:
        start = pl.multiple_of(t * tt, tt)
        v_rows = k_ref[:, pl.ds(start, tt), :]                  # (TB, Tt, D)
    v_scaled = (v_rows * jnp.swapaxes(inv_denom, 1, 2)).astype(compute_dtype)

    # context[b, s, d] += sum_t e[b, s, t] * v_scaled[b, t, d]  (MXU)
    acc_ref[...] += jnp.einsum("bst,btd->bsd", e.astype(compute_dtype), v_scaled,
                               preferred_element_type=jnp.float32)

    @pl.when(t == n_t - 1)
    def _():
        context = acc_ref[...]
        if l_norm:
            mean = jnp.mean(context, axis=-1, keepdims=True)
            var = jnp.mean(jnp.square(context - mean), axis=-1, keepdims=True)
            context = (context - mean) * jax.lax.rsqrt(var + eps)
            context = context * gamma_ref[...] + beta_ref[...]
        o_ref[...] = context.astype(o_ref.dtype)


def _vmem_bytes(tb, S, tt, D, in_bytes, out_bytes, c_bytes):
    """Per-grid-step VMEM footprint estimate (includes casts / temps / buffers)."""
    io = tb * (2 * S * D * in_bytes          # k slab (double-buffered across b)
               + 2 * D * tt * in_bytes       # q column block (double-buffered)
               + 2 * S * D * out_bytes)      # output block (double-buffered)
    acc = tb * S * D * 4                     # f32 accumulator scratch
    tmp = tb * (S * tt * (2 * 4 + 2 * c_bytes)   # energy, energy-m, e (+ cast)
                + S * D * (4 + c_bytes)          # partial product + k cast
                + tt * D * (4 + c_bytes)         # v_scaled (+ cast)
                + D * tt * c_bytes)              # scaled/cast q
    return io + acc + tmp


def _pick_tiles(B, S, D, in_bytes, out_bytes, c_bytes, budget):
    # --- query-column tile tt: whole slab if it fits, else the largest
    # lane-aligned (multiple-of-128, ideally 256) divisor of S that fits.
    div128 = sorted([d for d in range(128, S + 1, 128) if S % d == 0],
                    reverse=True)
    tt = None
    for cand in [S] + div128:
        if _vmem_bytes(1, S, cand, D, in_bytes, out_bytes, c_bytes) <= budget:
            tt = cand
            break
    if tt is None:
        tt = div128[-1] if div128 else S     # last resort (see TODO above)

    # --- batch tile tb: pack as many as fit, keep blocks full (B % tb == 0),
    # and keep >= 2 steps on the parallel axis so both v7x TCs get work.
    tb_cap = max(1, (B + 1) // 2) if B > 1 else 1
    tb = 1
    for cand in range(min(B, tb_cap), 0, -1):
        if B % cand == 0 and _vmem_bytes(cand, S, tt, D, in_bytes, out_bytes,
                                         c_bytes) <= budget:
            tb = cand
            break
    return tb, tt


def dot_attention(img_feats, exp_feats, gamma=None, beta=None, *,
                  l_norm=False, compute_dtype=jnp.bfloat16, out_dtype=None):
    B, S, D = img_feats.shape
    assert exp_feats.shape == (B, D, S), "exp_feats must be (B, D, S) for bmm(k, q)"
    if gamma is None:
        gamma = jnp.ones((1, D), img_feats.dtype)
    if beta is None:
        beta = jnp.zeros((1, D), img_feats.dtype)
    assert gamma.shape == (1, D) and beta.shape == (1, D)
    out_dtype = img_feats.dtype if out_dtype is None else out_dtype

    inv_scale = 1.0 / math.sqrt(float(S))   # torch: sqrt(k.shape[1]) with k=(B,S,D)

    in_bytes = jnp.dtype(img_feats.dtype).itemsize
    out_bytes = jnp.dtype(out_dtype).itemsize
    c_bytes = jnp.dtype(compute_dtype).itemsize

    # Per-generation VMEM budget (~0.7x capacity: ~90 MiB on 128 MiB parts,
    # ~44 MiB on v7x's 64 MiB per-core VMEM).
    try:
        vmem_cap = int(pltpu.get_tpu_info().vmem_capacity_bytes)
    except Exception:  # pragma: no cover - conservative fallback
        vmem_cap = 64 << 20
    budget = int(vmem_cap * 0.7)

    tb, tt = _pick_tiles(B, S, D, in_bytes, out_bytes, c_bytes, budget)
    grid = (B // tb, pl.cdiv(S, tt))

    footprint = _vmem_bytes(tb, S, tt, D, in_bytes, out_bytes, c_bytes)
    vmem_limit = int(min(vmem_cap * 0.85,
                         max(2 * footprint + (4 << 20), 32 << 20)))

    cost = pl.CostEstimate(
        flops=int(4 * B * S * S * D),
        transcendentals=int(B * S * S),
        bytes_accessed=int(B * S * D * in_bytes + B * D * S * in_bytes
                           + B * S * D * out_bytes),
    )

    kernel = functools.partial(_dot_attention_kernel, tt=tt, inv_scale=inv_scale,
                               l_norm=l_norm, compute_dtype=compute_dtype)

    return pl.pallas_call(
        kernel,
        out_shape=jax.ShapeDtypeStruct((B, S, D), out_dtype),
        grid_spec=pltpu.PrefetchScalarGridSpec(
            num_scalar_prefetch=0,
            grid=grid,
            in_specs=[
                pl.BlockSpec((tb, S, D), lambda b, t: (b, 0, 0)),   # k / v slab
                pl.BlockSpec((tb, D, tt), lambda b, t: (b, 0, t)),  # q columns
                pl.BlockSpec((1, D), lambda b, t: (0, 0)),          # LN gamma
                pl.BlockSpec((1, D), lambda b, t: (0, 0)),          # LN beta
            ],
            out_specs=pl.BlockSpec((tb, S, D), lambda b, t: (b, 0, 0)),
            scratch_shapes=[pltpu.VMEM((tb, S, D), jnp.float32)],   # f32 accumulator
        ),
        compiler_params=pltpu.CompilerParams(
            dimension_semantics=("parallel", "arbitrary"),
            vmem_limit_bytes=vmem_limit),
        cost_estimate=cost,
    )(img_feats, exp_feats, gamma, beta)


def _reference(img_feats, exp_feats, gamma, beta, *, l_norm=False, eps=1e-5):
    S = img_feats.shape[1]
    energy = jnp.einsum("bsd,bdt->bst", img_feats, exp_feats,
                        precision=jax.lax.Precision.HIGHEST) / math.sqrt(float(S))
    attn = jax.nn.softmax(energy, axis=1)
    context = jnp.einsum("bst,btd->bsd", attn, img_feats,
                         precision=jax.lax.Precision.HIGHEST)
    if l_norm:
        mean = jnp.mean(context, axis=-1, keepdims=True)
        var = jnp.mean(jnp.square(context - mean), axis=-1, keepdims=True)
        context = (context - mean) * jax.lax.rsqrt(var + eps)
        context = context * gamma[None] + beta[None]
    return context


if __name__ == "__main__":
    B, S, D = 2, 8, 128   # small, but D is lane-dense (multiple of 128)
    key = jax.random.PRNGKey(0)
    k_img, k_exp = jax.random.split(key)

    img_feats = jax.random.normal(k_img, (B, S, D), dtype=jnp.float32)
    exp_feats = 0.5 * jax.random.normal(k_exp, (B, D, S), dtype=jnp.float32)

    # Deterministic LayerNorm params (PyTorch default init: ones / zeros).
    gamma = jnp.ones((1, D), dtype=jnp.float32)
    beta = jnp.zeros((1, D), dtype=jnp.float32)

    ok = True
    # f32 inputs, both compute dtypes, with/without LayerNorm.
    for l_norm in (False, True):
        for compute_dtype, tol in ((jnp.float32, 1e-2), (jnp.bfloat16, 1e-1)):
            out = jax.block_until_ready(
                dot_attention(img_feats, exp_feats, gamma, beta,
                              l_norm=l_norm, compute_dtype=compute_dtype))
            ref = _reference(img_feats, exp_feats, gamma, beta, l_norm=l_norm)
            ok = ok and bool(jnp.allclose(out, ref, atol=tol, rtol=tol))

    # bf16 I/O path (memory-bound regime: halves k/q/out HBM traffic).
    img_bf16 = img_feats.astype(jnp.bfloat16)
    exp_bf16 = exp_feats.astype(jnp.bfloat16)
    out = jax.block_until_ready(dot_attention(img_bf16, exp_bf16, l_norm=False))
    ref = _reference(img_bf16.astype(jnp.float32), exp_bf16.astype(jnp.float32),
                     gamma, beta, l_norm=False)
    ok = ok and bool(jnp.allclose(out.astype(jnp.float32), ref,
                                  atol=2.5e-1, rtol=2.5e-1))

    print("KERNEL_OK" if ok else "KERNEL_MISMATCH")
</pallas_src>

<mosaic_0001>
module attributes {stable_mosaic.version = 11 : i64} {
  func.func @_dot_attention_kernel(%arg0: i32, %arg1: i32, %arg2: memref<1x8x128xf32, #tpu.memory_space<vmem>>, %arg3: memref<1x128x8xf32, #tpu.memory_space<vmem>>, %arg4: memref<1x128xf32, #tpu.memory_space<vmem>>, %arg5: memref<1x128xf32, #tpu.memory_space<vmem>>, %arg6: memref<1x8x128xf32, #tpu.memory_space<vmem>>, %arg7: memref<1x8x128xf32, #tpu.memory_space<vmem>>) attributes {dimension_semantics = [#tpu.dimension_semantics<parallel>, #tpu.dimension_semantics<arbitrary>], iteration_bounds = array<i64: 2, 1>, scalar_prefetch = 0 : i64, scratch_operands = 1 : i64, tpu.core_type = #tpu.core_type<tc>, window_params = [{transform_indices = @transform_0, window_bounds = array<i64: 1, 8, 128>}, {transform_indices = @transform_1, window_bounds = array<i64: 1, 128, 8>}, {pipeline_mode = #tpu.pipeline_mode<synchronous>, transform_indices = @transform_2, window_bounds = array<i64: 1, 128>}, {pipeline_mode = #tpu.pipeline_mode<synchronous>, transform_indices = @transform_3, window_bounds = array<i64: 1, 128>}, {transform_indices = @transform_4, window_bounds = array<i64: 1, 8, 128>}]} {
    %c0_i32 = arith.constant 0 : i32
    %0 = arith.cmpi eq, %arg1, %c0_i32 : i32
    %1 = arith.extui %0 : i1 to i32
    %c0_i32_0 = arith.constant 0 : i32
    %2 = arith.cmpi ne, %1, %c0_i32_0 : i32
    scf.if %2 {
      %cst_18 = arith.constant 0.000000e+00 : f32
      %26 = vector.broadcast %cst_18 : f32 to vector<1x8x128xf32>
      %c0_19 = arith.constant 0 : index
      %c0_20 = arith.constant 0 : index
      %c0_21 = arith.constant 0 : index
      %27 = vector.load %arg7[%c0_19, %c0_20, %c0_21] : memref<1x8x128xf32, #tpu.memory_space<vmem>>, vector<1x8x128xf32>
      tpu.vector_store %arg7[%c0_19, %c0_20, %c0_21], %26 {strides = array<i32>} : memref<1x8x128xf32, #tpu.memory_space<vmem>>, vector<1x8x128xf32>,
    } else {
    }
    %c0 = arith.constant 0 : index
    %c0_1 = arith.constant 0 : index
    %c0_2 = arith.constant 0 : index
    %3 = vector.load %arg2[%c0, %c0_1, %c0_2] : memref<1x8x128xf32, #tpu.memory_space<vmem>>, vector<1x8x128xf32>
    %c0_3 = arith.constant 0 : index
    %c0_4 = arith.constant 0 : index
    %c0_5 = arith.constant 0 : index
    %4 = vector.load %arg3[%c0_3, %c0_4, %c0_5] : memref<1x128x8xf32, #tpu.memory_space<vmem>>, vector<1x128x8xf32>
    %cst = arith.constant 0.353553385 : f32
    %5 = vector.broadcast %cst : f32 to vector<1x128x8xf32>
    %6 = arith.mulf %4, %5 : vector<1x128x8xf32>
    "tpu.trace_start"() <{level = 10 : i32, message = "bsd,bdt->bst"}> : () -> ()
    %cst_6 = arith.constant dense<0.000000e+00> : vector<1x8x8xf32>
    %7 = tpu.matmul %3, %6, %cst_6 {dimension_numbers = #tpu.dot_dimension_numbers<[2], [1], [1], [2], [0, 0, 0, 1, 1, 2], [0], [0]>} : vector<1x8x128xf32>, vector<1x128x8xf32>, vector<1x8x8xf32> -> vector<1x8x8xf32>
    "tpu.trace_stop"() : () -> ()
    %cst_7 = arith.constant dense<0xFF800000> : vector<1x8xf32>
    %8 = vector.multi_reduction <maximumf>, %7, %cst_7 [1] : vector<1x8x8xf32> to vector<1x8xf32>
    %9 = vector.shape_cast %8 : vector<1x8xf32> to vector<1x1x8xf32>
    %10 = vector.broadcast %9 : vector<1x1x8xf32> to vector<1x8x8xf32>
    %11 = arith.subf %7, %10 : vector<1x8x8xf32>
    %12 = math.exp %11 : vector<1x8x8xf32>
    %cst_8 = arith.constant dense<0.000000e+00> : vector<1x8xf32>
    %13 = vector.multi_reduction <add>, %12, %cst_8 [1] : vector<1x8x8xf32> to vector<1x8xf32>
    %14 = vector.shape_cast %13 : vector<1x8xf32> to vector<1x1x8xf32>
    %15 = tpu.reciprocal %14 {approx = true} : vector<1x1x8xf32> -> vector<1x1x8xf32>
    %16 = tpu.transpose %15, [0, 2, 1] : vector<1x1x8xf32> -> vector<1x8x1xf32>
    %17 = vector.broadcast %16 : vector<1x8x1xf32> to vector<1x8x128xf32>
    %18 = arith.mulf %3, %17 : vector<1x8x128xf32>
    %c0_9 = arith.constant 0 : index
    %c0_10 = arith.constant 0 : index
    %c0_11 = arith.constant 0 : index
    %19 = vector.load %arg7[%c0_9, %c0_10, %c0_11] : memref<1x8x128xf32, #tpu.memory_space<vmem>>, vector<1x8x128xf32>
    "tpu.trace_start"() <{level = 10 : i32, message = "bst,btd->bsd"}> : () -> ()
    %cst_12 = arith.constant dense<0.000000e+00> : vector<1x8x128xf32>
    %20 = tpu.matmul %12, %18, %cst_12 {dimension_numbers = #tpu.dot_dimension_numbers<[2], [1], [1], [2], [0, 0, 0, 1, 1, 2], [0], [0]>} : vector<1x8x8xf32>, vector<1x8x128xf32>, vector<1x8x128xf32> -> vector<1x8x128xf32>
    "tpu.trace_stop"() : () -> ()
    %21 = arith.addf %19, %20 : vector<1x8x128xf32>
    %c0_13 = arith.constant 0 : index
    %c0_14 = arith.constant 0 : index
    %c0_15 = arith.constant 0 : index
    %22 = vector.load %arg7[%c0_13, %c0_14, %c0_15] : memref<1x8x128xf32, #tpu.memory_space<vmem>>, vector<1x8x128xf32>
    tpu.vector_store %arg7[%c0_13, %c0_14, %c0_15], %21 {strides = array<i32>} : memref<1x8x128xf32, #tpu.memory_space<vmem>>, vector<1x8x128xf32>,
    %c0_i32_16 = arith.constant 0 : i32
    %23 = arith.cmpi eq, %arg1, %c0_i32_16 : i32
    %24 = arith.extui %23 : i1 to i32
    %c0_i32_17 = arith.constant 0 : i32
    %25 = arith.cmpi ne, %24, %c0_i32_17 : i32
    scf.if %25 {
      %c0_18 = arith.constant 0 : index
      %c0_19 = arith.constant 0 : index
      %c0_20 = arith.constant 0 : index
      %26 = vector.load %arg7[%c0_18, %c0_19, %c0_20] : memref<1x8x128xf32, #tpu.memory_space<vmem>>, vector<1x8x128xf32>
      %c0_21 = arith.constant 0 : index
      %c0_22 = arith.constant 0 : index
      %c0_23 = arith.constant 0 : index
      %27 = vector.load %arg6[%c0_21, %c0_22, %c0_23] : memref<1x8x128xf32, #tpu.memory_space<vmem>>, vector<1x8x128xf32>
      tpu.vector_store %arg6[%c0_21, %c0_22, %c0_23], %26 {strides = array<i32>} : memref<1x8x128xf32, #tpu.memory_space<vmem>>, vector<1x8x128xf32>,
    } else {
    }
    return
  }
  func.func @transform_0(%arg0: i32, %arg1: i32) -> (i32, i32, i32) {
    %c0_i32 = arith.constant 0 : i32
    %c0_i32_0 = arith.constant 0 : i32
    %c0_i32_1 = arith.constant 0 : i32
    return %arg0, %c0_i32, %c0_i32_0 : i32, i32, i32
  }
  func.func @transform_1(%arg0: i32, %arg1: i32) -> (i32, i32, i32) {
    %c0_i32 = arith.constant 0 : i32
    %c0_i32_0 = arith.constant 0 : i32
    return %arg0, %c0_i32, %arg1 : i32, i32, i32
  }
  func.func @transform_2(%arg0: i32, %arg1: i32) -> (i32, i32) {
    %c0_i32 = arith.constant 0 : i32
    %c0_i32_0 = arith.constant 0 : i32
    %c0_i32_1 = arith.constant 0 : i32
    return %c0_i32, %c0_i32_0 : i32, i32
  }
  func.func @transform_3(%arg0: i32, %arg1: i32) -> (i32, i32) {
    %c0_i32 = arith.constant 0 : i32
    %c0_i32_0 = arith.constant 0 : i32
    %c0_i32_1 = arith.constant 0 : i32
    return %c0_i32, %c0_i32_0 : i32, i32
  }
  func.func @transform_4(%arg0: i32, %arg1: i32) -> (i32, i32, i32) {
    %c0_i32 = arith.constant 0 : i32
    %c0_i32_0 = arith.constant 0 : i32
    %c0_i32_1 = arith.constant 0 : i32
    return %arg0, %c0_i32, %c0_i32_0 : i32, i32, i32
  }
}

</mosaic_0001>

<llo_original>
// kernel: tpu_custom_call.1
$region0: #{tpu_custom_call.1}
  #allocation0 [shape = 'u32[]', space=smem, size = 0x4, offset = 0x4, fixed_abs, tag = 'smem constant byte address 0x4 - core index']
  #allocation1 [shape = 'u32[72,128]{1,0:T(1,128)}', space=vmem, size = 0x9000, scoped, tag = 'internal scratch']
  #allocation2 [shape = 'f32[1,8,128]{2,1,0:T(8,128)}', space=vmem, size = 0x1000, scoped, tag = 'scratch operand']
  %s0 = inlined_call_operand.vmem [shape: f32[2,8,128], index: 0, kind: input, shape index: {}]
  %s1 = inlined_call_operand.vmem [shape: f32[2,128,8], index: 1, kind: input, shape index: {}]
  %s2 = inlined_call_operand.vmem [shape: f32[1,128], index: 2, kind: input, shape index: {}]
  %s3 = inlined_call_operand.vmem [shape: f32[1,128], index: 3, kind: input, shape index: {}]
  %s4 = inlined_call_operand.hbm [shape: f32[2,8,128], index: 4, kind: output, shape index: {}]
  %s5 = sld [smem:[#allocation0]]
  $region57: #{tpu_custom_call.1} parent=0
    _
  %s7 = ssub.s32 1, %s5
  %s8 = scalar_select 0, %s7, %s5
  $region1: #{tpu_custom_call.1} parent=0
    #allocation3 [shape = 'u8[8192]{0}', space=vmem, size = 0x2000, scoped, tag = 'output window, operand 0']
    #allocation4 [shape = 's32[2]{0}', space=sflag, size = 0x8, scoped, tag = 'scoped memory for tpu_custom_call.1']
    %9 = vsyncpa [#allocation4], 0
    %s10 = scalar_lea.sflag [#allocation4], 1
    %11 = vsyncpa %s10, 0
    loop: start=0, step=1, limit=4
    $region2: #{tpu_custom_call.1} parent=1 // loop_pre_header
      _
    $region3: #{tpu_custom_call.1} parent=1 // loop_header
      %s13 = sphi 0, %s17
      %p14 = scmp.ge.s32.totalorder %s13, 4
      %s20 = sphi 0, %s32
      %s21 = sphi 0, %s28
      %s22 = sphi 0, %s20
      %s23 = sphi 0, %s21
      %s24 = sphi 0, %s22
      %s25 = sphi 0, %s23
      %s35 = sphi 0, %s37
      %s38 = sphi 0, %s35
      %s39 = sphi 0, %s38
      %s55 = sphi 0, %s39
      %s63 = sphi 0, %s65
      %s66 = sphi 0, %s63
      %s67 = sphi 0, %s66
      %s83 = sphi 0, %s67
      %s87 = sphi 0, %s87
      %s89 = sphi 0, %s87
      %s90 = sphi 0, %s89
      %s104 = sphi 0, %s90
      %s108 = sphi 0, %s108
      %s110 = sphi 0, %s108
      %s111 = sphi 0, %s110
      %s125 = sphi 0, %s111
      %s131 = sphi 0, %s133
      %s134 = sphi 0, %s131
      %s135 = sphi 0, %s134
      %s151 = sphi 0, %s135
    $region4: #{tpu_custom_call.1} parent=1 // loop_header_branch
      %16 = sbr.rel (%p14) target = $region8
    $region5: #{tpu_custom_call.1} parent=1 // loop_body
      %s18 = ssub.s32 %s13, 1
      %s19 = ssub.s32 %s13, 2
      %s26 = sadd.s32 1, %s21
      %p27 = scmp.ge.s32.totalorder %s26, 1
      %s28 = scalar_select %p27, 0, %s26
      %s29 = sadd.s32 1, %s20
      %s30 = scalar_select %p27, %s29, %s20
      %p31 = scmp.ge.s32.totalorder %s30, 2
      %s32 = scalar_select %p31, 0, %s30
      %s33 = ssub.s32 %s20, %s32
      %p34 = scmp.eq.s32.totalorder %s33, 0
      %s36 = sadd.s32 %s35, 1
      %s37 = scalar_select %p34, %s35, %s36
      %p40 = pneg %p34
      %p41 = scmp.eq.s32.totalorder %s13, 1
      %p42 = por %p40, %p41
      %p43 = scmp.ne.s32.totalorder %s35, %s38
      %p44 = scmp.eq.s32.totalorder %s13, 0
      %p45 = por %p43, %p44
      %p46 = scmp.ne.s32.totalorder %s35, %s38
      %p47 = scmp.eq.s32.totalorder %s18, 1
      %p48 = por %p46, %p47
      %p49 = scmp.ne.s32.totalorder %s38, %s39
      %p50 = scmp.eq.s32.totalorder %s18, 0
      %p51 = por %p49, %p50
      %p52 = scmp.ne.s32.totalorder %s38, %s39
      %p53 = scmp.eq.s32.totalorder %s19, 1
      %p54 = por %p52, %p53
      %p56 = scmp.ne.s32.totalorder %s39, %s55
      %p57 = scmp.eq.s32.totalorder %s19, 0
      %p58 = por %p56, %p57
      %s59 = ssub.s32 %s20, %s32
      %s60 = ssub.s32 %s21, %s28
      %s61 = sor.u32 %s59, %s60
      %p62 = scmp.eq.s32.totalorder %s61, 0
      %s64 = sadd.s32 %s63, 1
      %s65 = scalar_select %p62, %s63, %s64
      %p68 = pneg %p62
      %p69 = scmp.eq.s32.totalorder %s13, 1
      %p70 = por %p68, %p69
      %p71 = scmp.ne.s32.totalorder %s63, %s66
      %p72 = scmp.eq.s32.totalorder %s13, 0
      %p73 = por %p71, %p72
      %p74 = scmp.ne.s32.totalorder %s63, %s66
      %p75 = scmp.eq.s32.totalorder %s18, 1
      %p76 = por %p74, %p75
      %p77 = scmp.ne.s32.totalorder %s66, %s67
      %p78 = scmp.eq.s32.totalorder %s18, 0
      %p79 = por %p77, %p78
      %p80 = scmp.ne.s32.totalorder %s66, %s67
      %p81 = scmp.eq.s32.totalorder %s19, 1
      %p82 = por %p80, %p81
      %p84 = scmp.ne.s32.totalorder %s67, %s83
      %p85 = scmp.eq.s32.totalorder %s19, 0
      %p86 = por %p84, %p85
      %s88 = sadd.s32 %s87, 1
      %p91 = scmp.eq.s32.totalorder %s13, 1
      %p92 = scmp.ne.s32.totalorder %s87, %s89
      %p93 = scmp.eq.s32.totalorder %s13, 0
      %p94 = por %p92, %p93
      %p95 = scmp.ne.s32.totalorder %s87, %s89
      %p96 = scmp.eq.s32.totalorder %s18, 1
      %p97 = por %p95, %p96
      %p98 = scmp.ne.s32.totalorder %s89, %s90
      %p99 = scmp.eq.s32.totalorder %s18, 0
      %p100 = por %p98, %p99
      %p101 = scmp.ne.s32.totalorder %s89, %s90
      %p102 = scmp.eq.s32.totalorder %s19, 1
      %p103 = por %p101, %p102
      %p105 = scmp.ne.s32.totalorder %s90, %s104
      %p106 = scmp.eq.s32.totalorder %s19, 0
      %p107 = por %p105, %p106
      %s109 = sadd.s32 %s108, 1
      %p112 = scmp.eq.s32.totalorder %s13, 1
      %p113 = scmp.ne.s32.totalorder %s108, %s110
      %p114 = scmp.eq.s32.totalorder %s13, 0
      %p115 = por %p113, %p114
      %p116 = scmp.ne.s32.totalorder %s108, %s110
      %p117 = scmp.eq.s32.totalorder %s18, 1
      %p118 = por %p116, %p117
      %p119 = scmp.ne.s32.totalorder %s110, %s111
      %p120 = scmp.eq.s32.totalorder %s18, 0
      %p121 = por %p119, %p120
      %p122 = scmp.ne.s32.totalorder %s110, %s111
      %p123 = scmp.eq.s32.totalorder %s19, 1
      %p124 = por %p122, %p123
      %p126 = scmp.ne.s32.totalorder %s111, %s125
      %p127 = scmp.eq.s32.totalorder %s19, 0
      %p128 = por %p126, %p127
      %s129 = ssub.s32 %s20, %s32
      %p130 = scmp.eq.s32.totalorder %s129, 0
      %s132 = sadd.s32 %s131, 1
      %s133 = scalar_select %p130, %s131, %s132
      %p136 = pneg %p130
      %p137 = scmp.eq.s32.totalorder %s13, 1
      %p138 = por %p136, %p137
      %p139 = scmp.ne.s32.totalorder %s131, %s134
      %p140 = scmp.eq.s32.totalorder %s13, 0
      %p141 = por %p139, %p140
      %p142 = scmp.ne.s32.totalorder %s131, %s134
      %p143 = scmp.eq.s32.totalorder %s18, 1
      %p144 = por %p142, %p143
      %p145 = scmp.ne.s32.totalorder %s134, %s135
      %p146 = scmp.eq.s32.totalorder %s18, 0
      %p147 = por %p145, %p146
      %p148 = scmp.ne.s32.totalorder %s134, %s135
      %p149 = scmp.eq.s32.totalorder %s19, 1
      %p150 = por %p148, %p149
      %p152 = scmp.ne.s32.totalorder %s135, %s151
      %p153 = scmp.eq.s32.totalorder %s19, 0
      %p154 = por %p152, %p153
      %p155 = scmp.le.s32.totalorder 1, %s13
      %p156 = scmp.lt.s32.totalorder %s13, 3
      %p157 = pnand %p155, %p156
      %p158 = pneg %p157
      // Predicated region
      $region9: #{tpu_custom_call.1} parent=5 // pred_check
        _
      $region10: #{tpu_custom_call.1} parent=5 // pred_check_branch
        %160 = sbr.rel (%p157) target = $region12
      $region11: #{tpu_custom_call.1} parent=5 // pred_region
        %s161 = ssub.s32 %s13, 1
        // Predicated region
        $region13: #{tpu_custom_call.1} parent=11 // pred_check
          %p162 = pneg %p100
        $region14: #{tpu_custom_call.1} parent=11 // pred_check_branch
          %164 = sbr.rel (%p162) target = $region16
        $region15: #{tpu_custom_call.1} parent=11 // pred_region
          _
        $region16: #{tpu_custom_call.1} parent=11 // pred_fallthru
          _
        // Predicated region
        $region17: #{tpu_custom_call.1} parent=11 // pred_check
          %p165 = pneg %p121
        $region18: #{tpu_custom_call.1} parent=11 // pred_check_branch
          %167 = sbr.rel (%p165) target = $region20
        $region19: #{tpu_custom_call.1} parent=11 // pred_region
          _
        $region20: #{tpu_custom_call.1} parent=11 // pred_fallthru
          _
      $region12: #{tpu_custom_call.1} parent=5 // pred_fallthru
        _
      %p168 = scmp.lt.s32.totalorder %s13, 2
      // Predicated region
      $region21: #{tpu_custom_call.1} parent=5 // pred_check
        %p169 = pneg %p168
      $region22: #{tpu_custom_call.1} parent=5 // pred_check_branch
        %171 = sbr.rel (%p169) target = $region24
      $region23: #{tpu_custom_call.1} parent=5 // pred_region
        // Predicated region
        $region25: #{tpu_custom_call.1} parent=23 // pred_check
          %p172 = pneg %p45
        $region26: #{tpu_custom_call.1} parent=23 // pred_check_branch
          %174 = sbr.rel (%p172) target = $region28
        $region27: #{tpu_custom_call.1} parent=23 // pred_region
          %p175 = scmp.lt.s32.totalorder %s20, 1
          %s176 = scalar_select %p175, %s20, 1
          %s177 = smul.addr %s176, 8
          %s178 = scalar_lea.vmem %s0, %s177
        $region28: #{tpu_custom_call.1} parent=23 // pred_fallthru
          _
        // Predicated region
        $region29: #{tpu_custom_call.1} parent=23 // pred_check
          %p179 = pneg %p73
        $region30: #{tpu_custom_call.1} parent=23 // pred_check_branch
          %181 = sbr.rel (%p179) target = $region32
        $region31: #{tpu_custom_call.1} parent=23 // pred_region
          %p182 = scmp.lt.s32.totalorder %s20, 1
          %s183 = scalar_select %p182, %s20, 1
          %p184 = scmp.lt.s32.totalorder %s21, 0
          %s185 = scalar_select %p184, %s21, 0
          %s186 = smul.addr %s183, 16
          %s187 = sadd.s32 %s185, %s186
          %s188 = smul.addr %s187, 8
          %s189 = scalar_lea.vmem %s1, %s188
        $region32: #{tpu_custom_call.1} parent=23 // pred_fallthru
          _
      $region24: #{tpu_custom_call.1} parent=5 // pred_fallthru
        _
      %p190 = scmp.le.s32.totalorder 1, %s13
      %p191 = scmp.lt.s32.totalorder %s13, 3
      %p192 = pnand %p190, %p191
      %p193 = pneg %p192
      // Predicated region
      $region33: #{tpu_custom_call.1} parent=5 // pred_check
        _
      $region34: #{tpu_custom_call.1} parent=5 // pred_check_branch
        %195 = sbr.rel (%p192) target = $region36
      $region35: #{tpu_custom_call.1} parent=5 // pred_region
        %s196 = ssub.s32 %s13, 1
        %p197 = scmp.lt.s32.totalorder %s22, 1
        %s198 = scalar_select %p197, %s22, 1
        %s199 = smul.addr %s198, 8
        %s200 = scalar_lea.vmem %s0, %s199
        %p201 = pneg %p51
        %p202 = pneg %p48
        %p203 = scmp.lt.s32.totalorder %s22, 1
        %s204 = scalar_select %p203, %s22, 1
        %p205 = scmp.lt.s32.totalorder %s23, 0
        %s206 = scalar_select %p205, %s23, 0
        %s207 = smul.addr %s204, 16
        %s208 = sadd.s32 %s206, %s207
        %s209 = smul.addr %s208, 8
        %s210 = scalar_lea.vmem %s1, %s209
        %p211 = pneg %p79
        %p212 = pneg %p76
        %p213 = pneg %p100
        %p214 = pneg %p97
        %p215 = pneg %p121
        %p216 = pneg %p118
        %p217 = pneg %p147
        %p218 = pneg %p144
        %s219 = sand.u32 %s134, 1
        %s220 = scalar_lea.sflag [#allocation4], %s219
        %s221 = sand.u32 %s134, 1
        %s222 = smul.addr %s221, 8
        %s223 = scalar_lea.vmem [#allocation3], %s222
        %p224 = scmp.lt.s32.totalorder %s22, 1
        %s225 = scalar_select %p224, %s22, 1
        %s226 = smul.addr %s225, 8
        %s227 = scalar_lea.vmem %s0, %s226
        %p228 = scmp.lt.s32.totalorder %s22, 1
        %s229 = scalar_select %p228, %s22, 1
        %p230 = scmp.lt.s32.totalorder %s23, 0
        %s231 = scalar_select %p230, %s23, 0
        %s232 = smul.addr %s229, 16
        %s233 = sadd.s32 %s231, %s232
        %s234 = smul.addr %s233, 8
        %s235 = scalar_lea.vmem %s1, %s234
        %p236 = scmp.eq.s32.totalorder %s23, 0
        // Predicated region
        $region37: #{tpu_custom_call.1} parent=35 // pred_check
          %p237 = pneg %p236
        $region38: #{tpu_custom_call.1} parent=35 // pred_check_branch
          %239 = sbr.rel (%p237) target = $region40
        $region39: #{tpu_custom_call.1} parent=35 // pred_region
          %240 = vst [vmem:[#allocation2] sm:$0xff] 0.0
        $region40: #{tpu_custom_call.1} parent=35 // pred_fallthru
          _
        %v241 = vld [vmem:[%s227] sm:$0xff]
        %v242 = vld [vmem:[%s235] sm:$0xff]
        %v243 = vld [vmem:[%s235 + $0x8] sm:$0xff]
        %v244 = vld [vmem:[%s235 + $0x10] sm:$0xff]
        %v245 = vld [vmem:[%s235 + $0x18] sm:$0xff]
        %v246 = vld [vmem:[%s235 + $0x20] sm:$0xff]
        %v247 = vld [vmem:[%s235 + $0x28] sm:$0xff]
        %v248 = vld [vmem:[%s235 + $0x30] sm:$0xff]
        %v249 = vld [vmem:[%s235 + $0x38] sm:$0xff]
        %v250 = vld [vmem:[%s235 + $0x40] sm:$0xff]
        %v251 = vld [vmem:[%s235 + $0x48] sm:$0xff]
        %v252 = vld [vmem:[%s235 + $0x50] sm:$0xff]
        %v253 = vld [vmem:[%s235 + $0x58] sm:$0xff]
        %v254 = vld [vmem:[%s235 + $0x60] sm:$0xff]
        %v255 = vld [vmem:[%s235 + $0x68] sm:$0xff]
        %v256 = vld [vmem:[%s235 + $0x70] sm:$0xff]
        %v257 = vld [vmem:[%s235 + $0x78] sm:$0xff]
        %v258 = vmul.f32 %v242, 0.35355338
        %v259 = vmul.f32 %v243, 0.35355338
        %v260 = vmul.f32 %v244, 0.35355338
        %v261 = vmul.f32 %v245, 0.35355338
        %v262 = vmul.f32 %v246, 0.35355338
        %v263 = vmul.f32 %v247, 0.35355338
        %v264 = vmul.f32 %v248, 0.35355338
        %v265 = vmul.f32 %v249, 0.35355338
        %v266 = vmul.f32 %v250, 0.35355338
        %v267 = vmul.f32 %v251, 0.35355338
        %v268 = vmul.f32 %v252, 0.35355338
        %v269 = vmul.f32 %v253, 0.35355338
        %v270 = vmul.f32 %v254, 0.35355338
        %v271 = vmul.f32 %v255, 0.35355338
        %v272 = vmul.f32 %v256, 0.35355338
        %v273 = vmul.f32 %v257, 0.35355338
        %274 = vmatpush.msra.mxu0 %v273
        %275 = vmatpush.msra.mxu0 %v272
        %276 = vmatpush.msra.mxu0 %v271
        %277 = vmatpush.msra.mxu0 %v270
        %278 = vmatpush.msra.mxu0 %v269
        %279 = vmatpush.msra.mxu0 %v268
        %280 = vmatpush.msra.mxu0 %v267
        %281 = vmatpush.msra.mxu0 %v266
        %282 = vmatpush.msra.mxu0 %v265
        %283 = vmatpush.msra.mxu0 %v264
        %284 = vmatpush.msra.mxu0 %v263
        %285 = vmatpush.msra.mxu0 %v262
        %286 = vmatpush.msra.mxu0 %v261
        %287 = vmatpush.msra.mxu0 %v260
        %288 = vmatpush.msra.mxu0 %v259
        %289 = vmatpush.msra.mxu0 %v258
        %290 = vmatmul.f32.gmra.mxu0 %v241
        %v291 = vpop.f32.mrf.mxu0
        %v292 = vadd.f32 0.0, %v291
        %293 = vdwg.mxu0
        %vm294 = vcmask 64512
        %v295 = vsel %vm294, %v292, -inf
        %v296 = vrot.slane %v295, 4
        %v297 = vmax.f32 %v295, %v296
        %v298 = vrot.slane %v297, 2
        %v299 = vmax.f32 %v297, %v298
        %v300 = vrot.slane %v299, 1
        %v301 = vmax.f32 %v299, %v300
        %v302 = vsub.f32 %v292, %v301
        %v303 = vmul.f32 %v302, 1.442695
        %v304 = vpow.pop %v303
        %v305 = vsel %vm294, %v304, 0.0
        %v306 = vrot.slane %v305, 4
        %v307 = vadd.f32 %v305, %v306
        %v308 = vrot.slane %v307, 2
        %v309 = vadd.f32 %v307, %v308
        %v310 = vrot.slane %v309, 1
        %v311 = vadd.f32 %v309, %v310
        %v312 = vrcp.pop %v311
        %313 = vxpose.xlu0.b32.start [1/16] %v312, 128
        %314 = vxpose.xlu0.b32.cont [2/16] 0.0, 128
        %315 = vxpose.xlu0.b32.cont [3/16] 0.0, 128
        %316 = vxpose.xlu0.b32.cont [4/16] 0.0, 128
        %317 = vxpose.xlu0.b32.cont [5/16] 0.0, 128
        %318 = vxpose.xlu0.b32.cont [6/16] 0.0, 128
        %319 = vxpose.xlu0.b32.cont [7/16] 0.0, 128
        %320 = vxpose.xlu0.b32.cont [8/16] 0.0, 128
        %321 = vxpose.xlu0.b32.cont [9/16] 0.0, 128
        %322 = vxpose.xlu0.b32.cont [10/16] 0.0, 128
        %323 = vxpose.xlu0.b32.cont [11/16] 0.0, 128
        %324 = vxpose.xlu0.b32.cont [12/16] 0.0, 128
        %325 = vxpose.xlu0.b32.cont [13/16] 0.0, 128
        %326 = vxpose.xlu0.b32.cont [14/16] 0.0, 128
        %327 = vxpose.xlu0.b32.cont [15/16] 0.0, 128
        %328 = vxpose.xlu0.b32.end [16/16] 0.0, 128
        %v329 = vpop.trf.xlu0
        %v330 = vpop.trf.xlu0
        %v331 = vpop.trf.xlu0
        %v332 = vpop.trf.xlu0
        %v333 = vpop.trf.xlu0
        %v334 = vpop.trf.xlu0
        %v335 = vpop.trf.xlu0
        %v336 = vpop.trf.xlu0
        %v337 = vpop.trf.xlu0
        %v338 = vpop.trf.xlu0
        %v339 = vpop.trf.xlu0
        %v340 = vpop.trf.xlu0
        %v341 = vpop.trf.xlu0
        %v342 = vpop.trf.xlu0
        %v343 = vpop.trf.xlu0
        %v344 = vpop.trf.xlu0
        %346 = vset.pattern.permute.xlu0 0
        %347 = vperm.xlu0 %346, %v329
        %v348 = vpop.permute.xlu0 %347
        %v350 = vmul.f32 %v241, %v348
        %v351 = vld [vmem:[#allocation2] sm:$0xff]
        %v353 = vsel %vm294, %v304, 0
        %355 = vmatpush.msra.mxu0 0.0
        %356 = vmatpush.msra.mxu0 0.0
        %357 = vmatpush.msra.mxu0 0.0
        %358 = vmatpush.msra.mxu0 0.0
        %359 = vmatpush.msra.mxu0 0.0
        %360 = vmatpush.msra.mxu0 0.0
        %361 = vmatpush.msra.mxu0 0.0
        %362 = vmatpush.msra.mxu0 0.0
        %363 = vmatpush.msra.mxu0 0.0
        %364 = vmatpush.msra.mxu0 0.0
        %365 = vmatpush.msra.mxu0 0.0
        %366 = vmatpush.msra.mxu0 0.0
        %367 = vmatpush.msra.mxu0 0.0
        %368 = vmatpush.msra.mxu0 0.0
        %369 = vmatpush.msra.mxu0 0.0
        %370 = vmatpush.msra.mxu0 %v350
        %371 = vmatmul.f32.gmra.mxu0 %v353
        %v372 = vpop.f32.mrf.mxu0
        %v373 = vadd.f32 0.0, %v372
        %374 = vdwg.mxu0
        %v375 = vadd.f32 %v351, %v373
        %376 = vst [vmem:[#allocation2] sm:$0xff] %v375
        // Predicated region
        $region41: #{tpu_custom_call.1} parent=35 // pred_check
          %p377 = pneg %p236
        $region42: #{tpu_custom_call.1} parent=35 // pred_check_branch
          %379 = sbr.rel (%p377) target = $region44
        $region43: #{tpu_custom_call.1} parent=35 // pred_region
          %v380 = vld [vmem:[#allocation2] sm:$0xff]
          %381 = vst [vmem:[%s223] sm:$0xff] %v380
        $region44: #{tpu_custom_call.1} parent=35 // pred_fallthru
          _
        %s382 = sand.u32 %s134, 1
        %s383 = scalar_lea.sflag [#allocation4], %s382
        %s384 = sand.u32 %s134, 1
        %s385 = smul.addr %s384, 8
        %s386 = scalar_lea.vmem [#allocation3], %s385
        // Predicated region
        $region45: #{tpu_custom_call.1} parent=35 // pred_check
          %p387 = pneg %p144
        $region46: #{tpu_custom_call.1} parent=35 // pred_check_branch
          %389 = sbr.rel (%p387) target = $region48
        $region47: #{tpu_custom_call.1} parent=35 // pred_region
          %391 = vsyncadd %s383, 0
          %s392 = smul.addr %s22, 8
          %s393 = scalar_lea.hbm %s4, %s392
          %s395 = sshll.u32 %s386, 4
          %s396 = int_to_ptr.vmem [resolvable:$true] %s395
          %s397 = sshll.u32 %s393, 4
          %s398 = int_to_ptr.hbm [resolvable:$true] %s397
          %400 = dma.vmem_to_hbm [thread:$0]  %s396, 128, %s398, %s383
        $region48: #{tpu_custom_call.1} parent=35 // pred_fallthru
          _
      $region36: #{tpu_custom_call.1} parent=5 // pred_fallthru
        _
      %p401 = scmp.le.s32.totalorder 2, %s13
      // Predicated region
      $region49: #{tpu_custom_call.1} parent=5 // pred_check
        %p402 = pneg %p401
      $region50: #{tpu_custom_call.1} parent=5 // pred_check_branch
        %404 = sbr.rel (%p402) target = $region52
      $region51: #{tpu_custom_call.1} parent=5 // pred_region
        %s405 = ssub.s32 %s13, 2
        // Predicated region
        $region53: #{tpu_custom_call.1} parent=51 // pred_check
          %p406 = pneg %p150
        $region54: #{tpu_custom_call.1} parent=51 // pred_check_branch
          %408 = sbr.rel (%p406) target = $region56
        $region55: #{tpu_custom_call.1} parent=51 // pred_region
          %s409 = sand.u32 %s135, 1
          %s410 = scalar_lea.sflag [#allocation4], %s409
          %s411 = sand.u32 %s135, 1
          %s412 = smul.addr %s411, 8
          %s413 = scalar_lea.vmem [#allocation3], %s412
          %415 = dma.done %s410, 128
        $region56: #{tpu_custom_call.1} parent=51 // pred_fallthru
          _
      $region52: #{tpu_custom_call.1} parent=5 // pred_fallthru
        _
    $region6: #{tpu_custom_call.1} parent=1 // loop_footer
      %s17 = sadd.s32 1, %s13
    $region7: #{tpu_custom_call.1} parent=1 // loop_footer_branch
      %12 = sbr.rel target = $region3
    $region8: #{tpu_custom_call.1} parent=1 // loop_exit
      _
    %416 = vsyncpa [#allocation4], 1
    %s417 = scalar_lea.sflag [#allocation4], 1
    %418 = vsyncpa %s417, 1

</llo_original>
